<compile_context>
chip_gen: v5e
topology: v5e:2x2
jax: 0.10.0
libtpu: 0.0.40
codegen_flags: <defaults>
</compile_context>

<pallas_src>
import math

import jax
import jax.numpy as jnp
from jax.experimental import pallas as pl
from jax.experimental.pallas import tpu as pltpu


# ----------------------------- Pallas kernel --------------------------------

def _projector_kernel(x_ref, w_ref, o_ref):
    # x_ref: (TM, Dp) row tile; w_ref: (Dp, Dp) canonical (K, N) RHS
    # (= A^T for forward, = A for inverse), VMEM-resident across all row
    # tiles. Contraction is over W's *major* dim, so no in-loop transpose.
    o_ref[...] = jnp.dot(
        x_ref[...], w_ref[...], preferred_element_type=jnp.float32
    ).astype(o_ref.dtype)


# ------------------------------ tiling helpers -------------------------------

def _round_up(n, m):
    return ((n + m - 1) // m) * m


def _vmem_budget_bytes():
    """Generation-dependent VMEM budget (physical capacity minus margin)."""
    try:
        cap = pltpu.get_tpu_info().vmem_capacity_bytes
    except Exception:
        cap = 64 * 1024 * 1024  # conservative fallback (v7x per-TC VMEM)
    return max(32 * 1024 * 1024, cap - 16 * 1024 * 1024)


def _pick_row_tile(M, Dp, x_itemsize, w_itemsize, budget_bytes, w_buffers, sub):
    """Largest sublane-aligned power-of-two row tile fitting the VMEM budget.

    Capped at ~M/2 so grid_m >= 2 whenever possible: the "parallel" grid axis
    then shards across v7x's two TensorCores (no effect on 1-TC v5e/v6e).
    """
    def need(tm):
        return (4 * tm * Dp * x_itemsize            # x + out tiles, double-buffered
                + w_buffers * Dp * Dp * w_itemsize)  # resident W

    cap = max(sub, _round_up(-(-M // 2), sub))       # keep grid_m >= 2 when possible
    tm = sub
    while tm * 2 <= cap and need(tm * 2) <= budget_bytes:
        tm *= 2
    return tm, need(tm)


# ------------------------------ wrapper --------------------------------------

def stiefel_project(x, W):
    """Compute x @ W with a row-tiled Pallas kernel. x: (..., D), W: (D, D).

    For the projector, W is already the transposed rotation (A^T), so this is
    exactly F.linear(x, A) = x @ A^T.
    """
    orig_shape = x.shape
    D = orig_shape[-1]
    x_flat = x.reshape(-1, D)
    M = x_flat.shape[0]

    if W.dtype != x_flat.dtype:
        # No-op for the cached f32 fast path; for bf16 activations the MXU
        # takes mixed precision, but we keep dtypes matched for simplicity.
        W = W.astype(x_flat.dtype)

    # Lane-dense feature dim: pad to a multiple of 128 (avoids masked vst),
    # slice back after the call. Padded columns are zeros -> exact result.
    Dp = _round_up(D, 128)
    if Dp != D:
        x_flat = jnp.pad(x_flat, ((0, 0), (0, Dp - D)))
        W = jnp.pad(W, ((0, Dp - D), (0, Dp - D)))

    itemsize = x_flat.dtype.itemsize
    sub = {4: 8, 2: 16, 1: 32}.get(itemsize, 8)      # sublane packing multiple
    budget = _vmem_budget_bytes()

    cost = pl.CostEstimate(
        flops=2 * M * Dp * Dp,
        transcendentals=0,
        bytes_accessed=(2 * M * Dp * itemsize        # read x + write out
                        + Dp * Dp * W.dtype.itemsize),  # read W once
    )

    def run(single_buffer_w):
        w_buffers = 1 if single_buffer_w else 2
        tm, need = _pick_row_tile(M, Dp, itemsize, W.dtype.itemsize,
                                  budget, w_buffers, sub)
        grid_m = pl.cdiv(M, tm)
        vmem_limit = int(max(budget, need + 4 * 1024 * 1024))

        w_spec_kwargs = {}
        if single_buffer_w:
            # Constant index_map -> W never re-DMAs; one buffer is enough.
            w_spec_kwargs["pipeline_mode"] = pl.Buffered(1)

        return pl.pallas_call(
            _projector_kernel,
            out_shape=jax.ShapeDtypeStruct((M, Dp), x_flat.dtype),
            grid=(grid_m,),
            in_specs=[
                # Partial last row tile: padded rows read undefined VMEM and
                # are dropped on writeback — safe because rows are independent.
                pl.BlockSpec((tm, Dp), lambda i: (i, 0)),
                pl.BlockSpec((Dp, Dp), lambda i: (0, 0), **w_spec_kwargs),
            ],
            out_specs=pl.BlockSpec((tm, Dp), lambda i: (i, 0)),
            compiler_params=pltpu.CompilerParams(
                dimension_semantics=("parallel",),   # rows independent -> megacore
                vmem_limit_bytes=vmem_limit,
            ),
            cost_estimate=cost,
        )(x_flat, W)

    try:
        out_flat = run(True)
    except Exception:
        # Older JAX without pipeline_mode / Buffered(1): fall back to default
        # double-buffering (VMEM accounting is adjusted accordingly).
        out_flat = run(False)

    if Dp != D:
        out_flat = out_flat[:, :D]
    return out_flat.reshape(orig_shape)


# --------------------- Parameter construction (plain JAX) -------------------

def make_stiefel_A(dim: int, t: float = 1.0, seed_angle: float = math.pi / 8,
                   key=None):
    """Deterministic synthetic init mirroring SingleStiefelProjector.__init__."""
    if key is None:
        key = jax.random.PRNGKey(0)
    R = jax.random.normal(key, (dim, dim), dtype=jnp.float32)
    G = R - R.T                                   # skew-symmetric
    norm = jnp.sqrt(jnp.sum(G * G))               # Frobenius norm
    G = G * (seed_angle / norm)
    A = jax.scipy.linalg.expm(t * G)              # rotation in SO(dim)
    return A


class SingleStiefelProjectorPallas:
    def __init__(self, dim: int, t: float = 1.0,
                 seed_angle: float = math.pi / 8, key=None,
                 compute_dtype=jnp.float32):
        self.dim = dim
        A = make_stiefel_A(dim, t, seed_angle, key)
        self.A = A
        # Cache both RHS orientations once, in canonical (K, N) form:
        #   forward : x @ A^T            -> RHS = A^T
        #   inverse : y @ A_inv^T = y @ A -> RHS = A
        # Kept in f32 by default so orthogonality (round-trip) isn't degraded.
        self.W_fwd = jnp.asarray(A.T, dtype=compute_dtype)
        self.W_inv = jnp.asarray(A, dtype=compute_dtype)

    def forward(self, x):
        return stiefel_project(x, self.W_fwd)

    def inverse(self, y):
        return stiefel_project(y, self.W_inv)


# ---------------------------------- main -------------------------------------

if __name__ == "__main__":
    dim = 128          # lane-dense feature dim (full 128-wide lane axis)
    B, S = 2, 8

    key = jax.random.PRNGKey(0)
    k_param, k_x = jax.random.split(key)

    proj = SingleStiefelProjectorPallas(dim, t=1.0, key=k_param)

    # x ∈ (B, S, D) — exercises the "(B, ..., D)" broadcasting convention.
    x = jax.random.normal(k_x, (B, S, dim), dtype=jnp.float32)

    y = jax.block_until_ready(proj.forward(x))

    # Correctness check against plain-JAX reference (x @ A^T).
    y_ref = jnp.einsum("bsd,kd->bsk", x, proj.A)
    assert y.shape == (B, S, dim)
    assert jnp.allclose(y, y_ref, atol=1e-4, rtol=1e-4), "mismatch vs reference"

    # Round-trip sanity: inverse(forward(x)) ≈ x (A is orthogonal).
    x_rt = jax.block_until_ready(proj.inverse(y))
    assert jnp.allclose(x_rt, x, atol=5e-4, rtol=5e-4), "inverse round-trip failed"

    print("KERNEL_OK")
</pallas_src>

<mosaic_0001>
module attributes {stable_mosaic.version = 11 : i64} {
  func.func @_projector_kernel(%arg0: i32, %arg1: memref<8x128xf32, #tpu.memory_space<vmem>>, %arg2: memref<128x128xf32, #tpu.memory_space<vmem>>, %arg3: memref<8x128xf32, #tpu.memory_space<vmem>>) attributes {dimension_semantics = [#tpu.dimension_semantics<parallel>], iteration_bounds = array<i64: 2>, scalar_prefetch = 0 : i64, scratch_operands = 0 : i64, tpu.core_type = #tpu.core_type<tc>, window_params = [{transform_indices = @transform_0, window_bounds = array<i64: 8, 128>}, {pipeline_mode = #tpu.pipeline_mode<synchronous>, transform_indices = @transform_1, window_bounds = array<i64: 128, 128>}, {transform_indices = @transform_2, window_bounds = array<i64: 8, 128>}]} {
    %c0 = arith.constant 0 : index
    %c0_0 = arith.constant 0 : index
    %0 = vector.load %arg1[%c0, %c0_0] : memref<8x128xf32, #tpu.memory_space<vmem>>, vector<8x128xf32>
    %c0_1 = arith.constant 0 : index
    %c0_2 = arith.constant 0 : index
    %1 = vector.load %arg2[%c0_1, %c0_2] : memref<128x128xf32, #tpu.memory_space<vmem>>, vector<128x128xf32>
    %cst = arith.constant dense<0.000000e+00> : vector<8x128xf32>
    %2 = tpu.matmul %0, %1, %cst {dimension_numbers = #tpu.dot_dimension_numbers<[1], [0], [0], [1], [0, 0, 1, 1], [], []>} : vector<8x128xf32>, vector<128x128xf32>, vector<8x128xf32> -> vector<8x128xf32>
    %c0_3 = arith.constant 0 : index
    %c0_4 = arith.constant 0 : index
    %3 = vector.load %arg3[%c0_3, %c0_4] : memref<8x128xf32, #tpu.memory_space<vmem>>, vector<8x128xf32>
    tpu.vector_store %arg3[%c0_3, %c0_4], %2 {strides = array<i32>} : memref<8x128xf32, #tpu.memory_space<vmem>>, vector<8x128xf32>,
    return
  }
  func.func @transform_0(%arg0: i32) -> (i32, i32) {
    %c0_i32 = arith.constant 0 : i32
    %c0_i32_0 = arith.constant 0 : i32
    return %arg0, %c0_i32 : i32, i32
  }
  func.func @transform_1(%arg0: i32) -> (i32, i32) {
    %c0_i32 = arith.constant 0 : i32
    %c0_i32_0 = arith.constant 0 : i32
    %c0_i32_1 = arith.constant 0 : i32
    return %c0_i32, %c0_i32_0 : i32, i32
  }
  func.func @transform_2(%arg0: i32) -> (i32, i32) {
    %c0_i32 = arith.constant 0 : i32
    %c0_i32_0 = arith.constant 0 : i32
    return %arg0, %c0_i32 : i32, i32
  }
}

module attributes {stable_mosaic.version = 11 : i64} {
  func.func @_projector_kernel(%arg0: i32, %arg1: memref<8x128xf32, #tpu.memory_space<vmem>>, %arg2: memref<128x128xf32, #tpu.memory_space<vmem>>, %arg3: memref<8x128xf32, #tpu.memory_space<vmem>>) attributes {dimension_semantics = [#tpu.dimension_semantics<parallel>], iteration_bounds = array<i64: 2>, scalar_prefetch = 0 : i64, scratch_operands = 0 : i64, tpu.core_type = #tpu.core_type<tc>, window_params = [{transform_indices = @transform_0, window_bounds = array<i64: 8, 128>}, {pipeline_mode = #tpu.pipeline_mode<synchronous>, transform_indices = @transform_1, window_bounds = array<i64: 128, 128>}, {transform_indices = @transform_2, window_bounds = array<i64: 8, 128>}]} {
    %c0 = arith.constant 0 : index
    %c0_0 = arith.constant 0 : index
    %0 = vector.load %arg1[%c0, %c0_0] : memref<8x128xf32, #tpu.memory_space<vmem>>, vector<8x128xf32>
    %c0_1 = arith.constant 0 : index
    %c0_2 = arith.constant 0 : index
    %1 = vector.load %arg2[%c0_1, %c0_2] : memref<128x128xf32, #tpu.memory_space<vmem>>, vector<128x128xf32>
    %cst = arith.constant dense<0.000000e+00> : vector<8x128xf32>
    %2 = tpu.matmul %0, %1, %cst {dimension_numbers = #tpu.dot_dimension_numbers<[1], [0], [0], [1], [0, 0, 1, 1], [], []>} : vector<8x128xf32>, vector<128x128xf32>, vector<8x128xf32> -> vector<8x128xf32>
    %c0_3 = arith.constant 0 : index
    %c0_4 = arith.constant 0 : index
    %3 = vector.load %arg3[%c0_3, %c0_4] : memref<8x128xf32, #tpu.memory_space<vmem>>, vector<8x128xf32>
    tpu.vector_store %arg3[%c0_3, %c0_4], %2 {strides = array<i32>} : memref<8x128xf32, #tpu.memory_space<vmem>>, vector<8x128xf32>,
    return
  }
  func.func @transform_0(%arg0: i32) -> (i32, i32) {
    %c0_i32 = arith.constant 0 : i32
    %c0_i32_0 = arith.constant 0 : i32
    return %arg0, %c0_i32 : i32, i32
  }
  func.func @transform_1(%arg0: i32) -> (i32, i32) {
    %c0_i32 = arith.constant 0 : i32
    %c0_i32_0 = arith.constant 0 : i32
    %c0_i32_1 = arith.constant 0 : i32
    return %c0_i32, %c0_i32_0 : i32, i32
  }
  func.func @transform_2(%arg0: i32) -> (i32, i32) {
    %c0_i32 = arith.constant 0 : i32
    %c0_i32_0 = arith.constant 0 : i32
    return %arg0, %c0_i32 : i32, i32
  }
}

</mosaic_0001>

<llo_original>
// kernel: tpu_custom_call.1
$region0: #{tpu_custom_call.1}
  #allocation0 [shape = 'u32[]', space=smem, size = 0x4, offset = 0x4, fixed_abs, tag = 'smem constant byte address 0x4 - core index']
  #allocation1 [shape = 'u32[72,128]{1,0:T(1,128)}', space=vmem, size = 0x9000, scoped, tag = 'internal scratch']
  %s0 = inlined_call_operand.hbm [shape: f32[16,128], index: 0, kind: input, shape index: {}]
  %s1 = inlined_call_operand.hbm [shape: f32[128,128], index: 1, kind: input, shape index: {}]
  %s2 = inlined_call_operand.hbm [shape: f32[16,128], index: 2, kind: output, shape index: {}]
  %s3 = sld [smem:[#allocation0]]
  $region49: #{tpu_custom_call.1} parent=0
    _
  %s5 = ssub.s32 1, %s3
  %s6 = scalar_select 0, %s5, %s3
  $region1: #{tpu_custom_call.1} parent=0
    #allocation2 [shape = 'u8[8192]{0}', space=vmem, size = 0x2000, scoped, tag = 'input window, operand 0']
    #allocation3 [shape = 's32[2]{0}', space=sflag, size = 0x8, scoped, tag = 'scoped memory for tpu_custom_call.1']
    #allocation4 [shape = 's32[2]{0}', space=sflag, size = 0x8, scoped, tag = 'scoped memory for tpu_custom_call.1']
    #allocation5 [shape = 'u8[65536]{0}', space=vmem, size = 0x10000, scoped, tag = 'input window, operand 1, single buffered']
    #allocation6 [shape = 's32[1]{0}', space=sflag, size = 0x4, scoped, tag = 'scoped memory for tpu_custom_call.1']
    #allocation7 [shape = 'u8[8192]{0}', space=vmem, size = 0x2000, scoped, tag = 'output window, operand 0']
    %7 = vsyncpa [#allocation3], 0
    %s8 = scalar_lea.sflag [#allocation3], 1
    %9 = vsyncpa %s8, 0
    %10 = vsyncpa [#allocation6], 0
    %11 = vsyncpa [#allocation4], 0
    %s12 = scalar_lea.sflag [#allocation4], 1
    %13 = vsyncpa %s12, 0
    loop: start=0, step=1, limit=4
    $region2: #{tpu_custom_call.1} parent=1 // loop_pre_header
      _
    $region3: #{tpu_custom_call.1} parent=1 // loop_header
      %s15 = sphi 0, %s19
      %p16 = scmp.ge.s32.totalorder %s15, 4
      %s25 = sphi 0, %s27
      %s28 = sphi 0, %s25
      %s29 = sphi 0, %s28
      %s45 = sphi 0, %s29
      %s49 = sphi 0, %s49
      %s51 = sphi 0, %s49
      %s52 = sphi 0, %s51
      %s66 = sphi 0, %s52
      %s72 = sphi 0, %s74
      %s75 = sphi 0, %s72
      %s76 = sphi 0, %s75
      %s92 = sphi 0, %s76
    $region4: #{tpu_custom_call.1} parent=1 // loop_header_branch
      %18 = sbr.rel (%p16) target = $region8
    $region5: #{tpu_custom_call.1} parent=1 // loop_body
      %s20 = ssub.s32 %s15, 1
      %s21 = ssub.s32 %s15, 2
      %s22 = sadd.s32 %s15, 1
      %s23 = ssub.s32 %s15, %s22
      %p24 = scmp.eq.s32.totalorder %s23, 0
      %s26 = sadd.s32 %s25, 1
      %s27 = scalar_select %p24, %s25, %s26
      %p30 = pneg %p24
      %p31 = scmp.eq.s32.totalorder %s15, 1
      %p32 = por %p30, %p31
      %p33 = scmp.ne.s32.totalorder %s25, %s28
      %p34 = scmp.eq.s32.totalorder %s15, 0
      %p35 = por %p33, %p34
      %p36 = scmp.ne.s32.totalorder %s25, %s28
      %p37 = scmp.eq.s32.totalorder %s20, 1
      %p38 = por %p36, %p37
      %p39 = scmp.ne.s32.totalorder %s28, %s29
      %p40 = scmp.eq.s32.totalorder %s20, 0
      %p41 = por %p39, %p40
      %p42 = scmp.ne.s32.totalorder %s28, %s29
      %p43 = scmp.eq.s32.totalorder %s21, 1
      %p44 = por %p42, %p43
      %p46 = scmp.ne.s32.totalorder %s29, %s45
      %p47 = scmp.eq.s32.totalorder %s21, 0
      %p48 = por %p46, %p47
      %s50 = sadd.s32 %s49, 1
      %p53 = scmp.eq.s32.totalorder %s15, 1
      %p54 = scmp.ne.s32.totalorder %s49, %s51
      %p55 = scmp.eq.s32.totalorder %s15, 0
      %p56 = por %p54, %p55
      %p57 = scmp.ne.s32.totalorder %s49, %s51
      %p58 = scmp.eq.s32.totalorder %s20, 1
      %p59 = por %p57, %p58
      %p60 = scmp.ne.s32.totalorder %s51, %s52
      %p61 = scmp.eq.s32.totalorder %s20, 0
      %p62 = por %p60, %p61
      %p63 = scmp.ne.s32.totalorder %s51, %s52
      %p64 = scmp.eq.s32.totalorder %s21, 1
      %p65 = por %p63, %p64
      %p67 = scmp.ne.s32.totalorder %s52, %s66
      %p68 = scmp.eq.s32.totalorder %s21, 0
      %p69 = por %p67, %p68
      %s70 = ssub.s32 %s15, %s22
      %p71 = scmp.eq.s32.totalorder %s70, 0
      %s73 = sadd.s32 %s72, 1
      %s74 = scalar_select %p71, %s72, %s73
      %p77 = pneg %p71
      %p78 = scmp.eq.s32.totalorder %s15, 1
      %p79 = por %p77, %p78
      %p80 = scmp.ne.s32.totalorder %s72, %s75
      %p81 = scmp.eq.s32.totalorder %s15, 0
      %p82 = por %p80, %p81
      %p83 = scmp.ne.s32.totalorder %s72, %s75
      %p84 = scmp.eq.s32.totalorder %s20, 1
      %p85 = por %p83, %p84
      %p86 = scmp.ne.s32.totalorder %s75, %s76
      %p87 = scmp.eq.s32.totalorder %s20, 0
      %p88 = por %p86, %p87
      %p89 = scmp.ne.s32.totalorder %s75, %s76
      %p90 = scmp.eq.s32.totalorder %s21, 1
      %p91 = por %p89, %p90
      %p93 = scmp.ne.s32.totalorder %s76, %s92
      %p94 = scmp.eq.s32.totalorder %s21, 0
      %p95 = por %p93, %p94
      %p96 = scmp.le.s32.totalorder 1, %s15
      %p97 = scmp.lt.s32.totalorder %s15, 3
      %p98 = pnand %p96, %p97
      %p99 = pneg %p98
      // Predicated region
      $region9: #{tpu_custom_call.1} parent=5 // pred_check
        _
      $region10: #{tpu_custom_call.1} parent=5 // pred_check_branch
        %101 = sbr.rel (%p98) target = $region12
      $region11: #{tpu_custom_call.1} parent=5 // pred_region
        %s102 = ssub.s32 %s15, 1
        // Predicated region
        $region13: #{tpu_custom_call.1} parent=11 // pred_check
          %p103 = pneg %p62
        $region14: #{tpu_custom_call.1} parent=11 // pred_check_branch
          %105 = sbr.rel (%p103) target = $region16
        $region15: #{tpu_custom_call.1} parent=11 // pred_region
          %107 = vsyncadd [#allocation6], 0
          %s108 = sshll.u32 %s1, 4
          %s109 = int_to_ptr.hbm [resolvable:$true] %s108
          %s110 = sshll.u32 [#allocation5], 4
          %s111 = int_to_ptr.vmem [resolvable:$true] %s110
          %116 = dma.hbm_to_vmem [thread:$0]  %s109, 2048, %s111, [#allocation6], 128, 128, 8
        $region16: #{tpu_custom_call.1} parent=11 // pred_fallthru
          _
      $region12: #{tpu_custom_call.1} parent=5 // pred_fallthru
        _
      %p117 = scmp.lt.s32.totalorder %s15, 2
      // Predicated region
      $region17: #{tpu_custom_call.1} parent=5 // pred_check
        %p118 = pneg %p117
      $region18: #{tpu_custom_call.1} parent=5 // pred_check_branch
        %120 = sbr.rel (%p118) target = $region20
      $region19: #{tpu_custom_call.1} parent=5 // pred_region
        // Predicated region
        $region21: #{tpu_custom_call.1} parent=19 // pred_check
          %p121 = pneg %p35
        $region22: #{tpu_custom_call.1} parent=19 // pred_check_branch
          %123 = sbr.rel (%p121) target = $region24
        $region23: #{tpu_custom_call.1} parent=19 // pred_region
          %s124 = sand.u32 %s25, 1
          %s125 = scalar_lea.sflag [#allocation3], %s124
          %s126 = sand.u32 %s25, 1
          %s127 = smul.addr %s126, 8
          %s128 = scalar_lea.vmem [#allocation2], %s127
          %130 = vsyncadd %s125, 0
          %s131 = smul.addr %s15, 8
          %s132 = scalar_lea.hbm %s0, %s131
          %s134 = sshll.u32 %s132, 4
          %s135 = int_to_ptr.hbm [resolvable:$true] %s134
          %s136 = sshll.u32 %s128, 4
          %s137 = int_to_ptr.vmem [resolvable:$true] %s136
          %139 = dma.hbm_to_vmem [thread:$0]  %s135, 128, %s137, %s125
        $region24: #{tpu_custom_call.1} parent=19 // pred_fallthru
          _
      $region20: #{tpu_custom_call.1} parent=5 // pred_fallthru
        _
      %p140 = scmp.le.s32.totalorder 1, %s15
      %p141 = scmp.lt.s32.totalorder %s15, 3
      %p142 = pnand %p140, %p141
      %p143 = pneg %p142
      // Predicated region
      $region25: #{tpu_custom_call.1} parent=5 // pred_check
        _
      $region26: #{tpu_custom_call.1} parent=5 // pred_check_branch
        %145 = sbr.rel (%p142) target = $region28
      $region27: #{tpu_custom_call.1} parent=5 // pred_region
        %s146 = ssub.s32 %s15, 1
        %s147 = sand.u32 %s28, 1
        %s148 = scalar_lea.sflag [#allocation3], %s147
        %s149 = sand.u32 %s28, 1
        %s150 = smul.addr %s149, 8
        %s151 = scalar_lea.vmem [#allocation2], %s150
        // Predicated region
        $region29: #{tpu_custom_call.1} parent=27 // pred_check
          %p152 = pneg %p41
        $region30: #{tpu_custom_call.1} parent=27 // pred_check_branch
          %154 = sbr.rel (%p152) target = $region32
        $region31: #{tpu_custom_call.1} parent=27 // pred_region
          %156 = dma.done %s148, 128
        $region32: #{tpu_custom_call.1} parent=27 // pred_fallthru
          _
        // Predicated region
        $region33: #{tpu_custom_call.1} parent=27 // pred_check
          %p157 = pneg %p62
        $region34: #{tpu_custom_call.1} parent=27 // pred_check_branch
          %159 = sbr.rel (%p157) target = $region36
        $region35: #{tpu_custom_call.1} parent=27 // pred_region
          %161 = dma.done [#allocation6], 2048
        $region36: #{tpu_custom_call.1} parent=27 // pred_fallthru
          _
        %s162 = sand.u32 %s28, 1
        %s163 = scalar_lea.sflag [#allocation3], %s162
        %s164 = sand.u32 %s28, 1
        %s165 = smul.addr %s164, 8
        %s166 = scalar_lea.vmem [#allocation2], %s165
        %p167 = pneg %p41
        %p168 = pneg %p38
        %p169 = pneg %p62
        %p170 = pneg %p59
        %p171 = pneg %p88
        %p172 = pneg %p85
        %s173 = sand.u32 %s75, 1
        %s174 = scalar_lea.sflag [#allocation4], %s173
        %s175 = sand.u32 %s75, 1
        %s176 = smul.addr %s175, 8
        %s177 = scalar_lea.vmem [#allocation7], %s176
        %v178 = vld [vmem:[%s151] sm:$0xff]
        %v179 = vld [vmem:[#allocation5] sm:$0xff]
        %v180 = vld [vmem:[#allocation5 + $0x8] sm:$0xff]
        %v181 = vld [vmem:[#allocation5 + $0x10] sm:$0xff]
        %v182 = vld [vmem:[#allocation5 + $0x18] sm:$0xff]
        %v183 = vld [vmem:[#allocation5 + $0x20] sm:$0xff]
        %v184 = vld [vmem:[#allocation5 + $0x28] sm:$0xff]
        %v185 = vld [vmem:[#allocation5 + $0x30] sm:$0xff]
        %v186 = vld [vmem:[#allocation5 + $0x38] sm:$0xff]
        %v187 = vld [vmem:[#allocation5 + $0x40] sm:$0xff]
        %v188 = vld [vmem:[#allocation5 + $0x48] sm:$0xff]
        %v189 = vld [vmem:[#allocation5 + $0x50] sm:$0xff]
        %v190 = vld [vmem:[#allocation5 + $0x58] sm:$0xff]
        %v191 = vld [vmem:[#allocation5 + $0x60] sm:$0xff]
        %v192 = vld [vmem:[#allocation5 + $0x68] sm:$0xff]
        %v193 = vld [vmem:[#allocation5 + $0x70] sm:$0xff]
        %v194 = vld [vmem:[#allocation5 + $0x78] sm:$0xff]
        %195 = vmatpush.msra.mxu0 %v194
        %196 = vmatpush.msra.mxu0 %v193
        %197 = vmatpush.msra.mxu0 %v192
        %198 = vmatpush.msra.mxu0 %v191
        %199 = vmatpush.msra.mxu0 %v190
        %200 = vmatpush.msra.mxu0 %v189
        %201 = vmatpush.msra.mxu0 %v188
        %202 = vmatpush.msra.mxu0 %v187
        %203 = vmatpush.msra.mxu0 %v186
        %204 = vmatpush.msra.mxu0 %v185
        %205 = vmatpush.msra.mxu0 %v184
        %206 = vmatpush.msra.mxu0 %v183
        %207 = vmatpush.msra.mxu0 %v182
        %208 = vmatpush.msra.mxu0 %v181
        %209 = vmatpush.msra.mxu0 %v180
        %210 = vmatpush.msra.mxu0 %v179
        %211 = vmatmul.f32.gmra.mxu0 %v178
        %v212 = vpop.f32.mrf.mxu0
        %v213 = vadd.f32 0.0, %v212
        %214 = vdwg.mxu0
        %215 = vst [vmem:[%s177] sm:$0xff] %v213
        %s216 = sand.u32 %s75, 1
        %s217 = scalar_lea.sflag [#allocation4], %s216
        %s218 = sand.u32 %s75, 1
        %s219 = smul.addr %s218, 8
        %s220 = scalar_lea.vmem [#allocation7], %s219
        // Predicated region
        $region37: #{tpu_custom_call.1} parent=27 // pred_check
          %p221 = pneg %p85
        $region38: #{tpu_custom_call.1} parent=27 // pred_check_branch
          %223 = sbr.rel (%p221) target = $region40
        $region39: #{tpu_custom_call.1} parent=27 // pred_region
          %225 = vsyncadd %s217, 0
          %s226 = smul.addr %s20, 8
          %s227 = scalar_lea.hbm %s2, %s226
          %s229 = sshll.u32 %s220, 4
          %s230 = int_to_ptr.vmem [resolvable:$true] %s229
          %s231 = sshll.u32 %s227, 4
          %s232 = int_to_ptr.hbm [resolvable:$true] %s231
          %234 = dma.vmem_to_hbm [thread:$0]  %s230, 128, %s232, %s217
        $region40: #{tpu_custom_call.1} parent=27 // pred_fallthru
          _
      $region28: #{tpu_custom_call.1} parent=5 // pred_fallthru
        _
      %p235 = scmp.le.s32.totalorder 2, %s15
      // Predicated region
      $region41: #{tpu_custom_call.1} parent=5 // pred_check
        %p236 = pneg %p235
      $region42: #{tpu_custom_call.1} parent=5 // pred_check_branch
        %238 = sbr.rel (%p236) target = $region44
      $region43: #{tpu_custom_call.1} parent=5 // pred_region
        %s239 = ssub.s32 %s15, 2
        // Predicated region
        $region45: #{tpu_custom_call.1} parent=43 // pred_check
          %p240 = pneg %p91
        $region46: #{tpu_custom_call.1} parent=43 // pred_check_branch
          %242 = sbr.rel (%p240) target = $region48
        $region47: #{tpu_custom_call.1} parent=43 // pred_region
          %s243 = sand.u32 %s76, 1
          %s244 = scalar_lea.sflag [#allocation4], %s243
          %s245 = sand.u32 %s76, 1
          %s246 = smul.addr %s245, 8
          %s247 = scalar_lea.vmem [#allocation7], %s246
          %249 = dma.done %s244, 128
        $region48: #{tpu_custom_call.1} parent=43 // pred_fallthru
          _
      $region44: #{tpu_custom_call.1} parent=5 // pred_fallthru
        _
    $region6: #{tpu_custom_call.1} parent=1 // loop_footer
      %s19 = sadd.s32 1, %s15
    $region7: #{tpu_custom_call.1} parent=1 // loop_footer_branch
      %14 = sbr.rel target = $region3
    $region8: #{tpu_custom_call.1} parent=1 // loop_exit
      _
    %250 = vsyncpa [#allocation3], 1
    %s251 = scalar_lea.sflag [#allocation3], 1
    %252 = vsyncpa %s251, 1
    %253 = vsyncpa [#allocation6], 1
    %254 = vsyncpa [#allocation4], 1
    %s255 = scalar_lea.sflag [#allocation4], 1
    %256 = vsyncpa %s255, 1

// kernel: tpu_custom_call.1
$region0: #{tpu_custom_call.1}
  #allocation0 [shape = 'u32[]', space=smem, size = 0x4, offset = 0x4, fixed_abs, tag = 'smem constant byte address 0x4 - core index']
  #allocation1 [shape = 'u32[72,128]{1,0:T(1,128)}', space=vmem, size = 0x9000, scoped, tag = 'internal scratch']
  %s0 = inlined_call_operand.hbm [shape: f32[16,128], index: 0, kind: input, shape index: {}]
  %s1 = inlined_call_operand.hbm [shape: f32[128,128], index: 1, kind: input, shape index: {}]
  %s2 = inlined_call_operand.hbm [shape: f32[16,128], index: 2, kind: output, shape index: {}]
  %s3 = sld [smem:[#allocation0]]
  $region49: #{tpu_custom_call.1} parent=0
    _
  %s5 = ssub.s32 1, %s3
  %s6 = scalar_select 0, %s5, %s3
  $region1: #{tpu_custom_call.1} parent=0
    #allocation2 [shape = 'u8[8192]{0}', space=vmem, size = 0x2000, scoped, tag = 'input window, operand 0']
    #allocation3 [shape = 's32[2]{0}', space=sflag, size = 0x8, scoped, tag = 'scoped memory for tpu_custom_call.1']
    #allocation4 [shape = 's32[2]{0}', space=sflag, size = 0x8, scoped, tag = 'scoped memory for tpu_custom_call.1']
    #allocation5 [shape = 'u8[65536]{0}', space=vmem, size = 0x10000, scoped, tag = 'input window, operand 1, single buffered']
    #allocation6 [shape = 's32[1]{0}', space=sflag, size = 0x4, scoped, tag = 'scoped memory for tpu_custom_call.1']
    #allocation7 [shape = 'u8[8192]{0}', space=vmem, size = 0x2000, scoped, tag = 'output window, operand 0']
    %7 = vsyncpa [#allocation3], 0
    %s8 = scalar_lea.sflag [#allocation3], 1
    %9 = vsyncpa %s8, 0
    %10 = vsyncpa [#allocation6], 0
    %11 = vsyncpa [#allocation4], 0
    %s12 = scalar_lea.sflag [#allocation4], 1
    %13 = vsyncpa %s12, 0
    loop: start=0, step=1, limit=4
    $region2: #{tpu_custom_call.1} parent=1 // loop_pre_header
      _
    $region3: #{tpu_custom_call.1} parent=1 // loop_header
      %s15 = sphi 0, %s19
      %p16 = scmp.ge.s32.totalorder %s15, 4
      %s25 = sphi 0, %s27
      %s28 = sphi 0, %s25
      %s29 = sphi 0, %s28
      %s45 = sphi 0, %s29
      %s49 = sphi 0, %s49
      %s51 = sphi 0, %s49
      %s52 = sphi 0, %s51
      %s66 = sphi 0, %s52
      %s72 = sphi 0, %s74
      %s75 = sphi 0, %s72
      %s76 = sphi 0, %s75
      %s92 = sphi 0, %s76
    $region4: #{tpu_custom_call.1} parent=1 // loop_header_branch
      %18 = sbr.rel (%p16) target = $region8
    $region5: #{tpu_custom_call.1} parent=1 // loop_body
      %s20 = ssub.s32 %s15, 1
      %s21 = ssub.s32 %s15, 2
      %s22 = sadd.s32 %s15, 1
      %s23 = ssub.s32 %s15, %s22
      %p24 = scmp.eq.s32.totalorder %s23, 0
      %s26 = sadd.s32 %s25, 1
      %s27 = scalar_select %p24, %s25, %s26
      %p30 = pneg %p24
      %p31 = scmp.eq.s32.totalorder %s15, 1
      %p32 = por %p30, %p31
      %p33 = scmp.ne.s32.totalorder %s25, %s28
      %p34 = scmp.eq.s32.totalorder %s15, 0
      %p35 = por %p33, %p34
      %p36 = scmp.ne.s32.totalorder %s25, %s28
      %p37 = scmp.eq.s32.totalorder %s20, 1
      %p38 = por %p36, %p37
      %p39 = scmp.ne.s32.totalorder %s28, %s29
      %p40 = scmp.eq.s32.totalorder %s20, 0
      %p41 = por %p39, %p40
      %p42 = scmp.ne.s32.totalorder %s28, %s29
      %p43 = scmp.eq.s32.totalorder %s21, 1
      %p44 = por %p42, %p43
      %p46 = scmp.ne.s32.totalorder %s29, %s45
      %p47 = scmp.eq.s32.totalorder %s21, 0
      %p48 = por %p46, %p47
      %s50 = sadd.s32 %s49, 1
      %p53 = scmp.eq.s32.totalorder %s15, 1
      %p54 = scmp.ne.s32.totalorder %s49, %s51
      %p55 = scmp.eq.s32.totalorder %s15, 0
      %p56 = por %p54, %p55
      %p57 = scmp.ne.s32.totalorder %s49, %s51
      %p58 = scmp.eq.s32.totalorder %s20, 1
      %p59 = por %p57, %p58
      %p60 = scmp.ne.s32.totalorder %s51, %s52
      %p61 = scmp.eq.s32.totalorder %s20, 0
      %p62 = por %p60, %p61
      %p63 = scmp.ne.s32.totalorder %s51, %s52
      %p64 = scmp.eq.s32.totalorder %s21, 1
      %p65 = por %p63, %p64
      %p67 = scmp.ne.s32.totalorder %s52, %s66
      %p68 = scmp.eq.s32.totalorder %s21, 0
      %p69 = por %p67, %p68
      %s70 = ssub.s32 %s15, %s22
      %p71 = scmp.eq.s32.totalorder %s70, 0
      %s73 = sadd.s32 %s72, 1
      %s74 = scalar_select %p71, %s72, %s73
      %p77 = pneg %p71
      %p78 = scmp.eq.s32.totalorder %s15, 1
      %p79 = por %p77, %p78
      %p80 = scmp.ne.s32.totalorder %s72, %s75
      %p81 = scmp.eq.s32.totalorder %s15, 0
      %p82 = por %p80, %p81
      %p83 = scmp.ne.s32.totalorder %s72, %s75
      %p84 = scmp.eq.s32.totalorder %s20, 1
      %p85 = por %p83, %p84
      %p86 = scmp.ne.s32.totalorder %s75, %s76
      %p87 = scmp.eq.s32.totalorder %s20, 0
      %p88 = por %p86, %p87
      %p89 = scmp.ne.s32.totalorder %s75, %s76
      %p90 = scmp.eq.s32.totalorder %s21, 1
      %p91 = por %p89, %p90
      %p93 = scmp.ne.s32.totalorder %s76, %s92
      %p94 = scmp.eq.s32.totalorder %s21, 0
      %p95 = por %p93, %p94
      %p96 = scmp.le.s32.totalorder 1, %s15
      %p97 = scmp.lt.s32.totalorder %s15, 3
      %p98 = pnand %p96, %p97
      %p99 = pneg %p98
      // Predicated region
      $region9: #{tpu_custom_call.1} parent=5 // pred_check
        _
      $region10: #{tpu_custom_call.1} parent=5 // pred_check_branch
        %101 = sbr.rel (%p98) target = $region12
      $region11: #{tpu_custom_call.1} parent=5 // pred_region
        %s102 = ssub.s32 %s15, 1
        // Predicated region
        $region13: #{tpu_custom_call.1} parent=11 // pred_check
          %p103 = pneg %p62
        $region14: #{tpu_custom_call.1} parent=11 // pred_check_branch
          %105 = sbr.rel (%p103) target = $region16
        $region15: #{tpu_custom_call.1} parent=11 // pred_region
          %107 = vsyncadd [#allocation6], 0
          %s108 = sshll.u32 %s1, 4
          %s109 = int_to_ptr.hbm [resolvable:$true] %s108
          %s110 = sshll.u32 [#allocation5], 4
          %s111 = int_to_ptr.vmem [resolvable:$true] %s110
          %116 = dma.hbm_to_vmem [thread:$0]  %s109, 2048, %s111, [#allocation6], 128, 128, 8
        $region16: #{tpu_custom_call.1} parent=11 // pred_fallthru
          _
      $region12: #{tpu_custom_call.1} parent=5 // pred_fallthru
        _
      %p117 = scmp.lt.s32.totalorder %s15, 2
      // Predicated region
      $region17: #{tpu_custom_call.1} parent=5 // pred_check
        %p118 = pneg %p117
      $region18: #{tpu_custom_call.1} parent=5 // pred_check_branch
        %120 = sbr.rel (%p118) target = $region20
      $region19: #{tpu_custom_call.1} parent=5 // pred_region
        // Predicated region
        $region21: #{tpu_custom_call.1} parent=19 // pred_check
          %p121 = pneg %p35
        $region22: #{tpu_custom_call.1} parent=19 // pred_check_branch
          %123 = sbr.rel (%p121) target = $region24
        $region23: #{tpu_custom_call.1} parent=19 // pred_region
          %s124 = sand.u32 %s25, 1
          %s125 = scalar_lea.sflag [#allocation3], %s124
          %s126 = sand.u32 %s25, 1
          %s127 = smul.addr %s126, 8
          %s128 = scalar_lea.vmem [#allocation2], %s127
          %130 = vsyncadd %s125, 0
          %s131 = smul.addr %s15, 8
          %s132 = scalar_lea.hbm %s0, %s131
          %s134 = sshll.u32 %s132, 4
          %s135 = int_to_ptr.hbm [resolvable:$true] %s134
          %s136 = sshll.u32 %s128, 4
          %s137 = int_to_ptr.vmem [resolvable:$true] %s136
          %139 = dma.hbm_to_vmem [thread:$0]  %s135, 128, %s137, %s125
        $region24: #{tpu_custom_call.1} parent=19 // pred_fallthru
          _
      $region20: #{tpu_custom_call.1} parent=5 // pred_fallthru
        _
      %p140 = scmp.le.s32.totalorder 1, %s15
      %p141 = scmp.lt.s32.totalorder %s15, 3
      %p142 = pnand %p140, %p141
      %p143 = pneg %p142
      // Predicated region
      $region25: #{tpu_custom_call.1} parent=5 // pred_check
        _
      $region26: #{tpu_custom_call.1} parent=5 // pred_check_branch
        %145 = sbr.rel (%p142) target = $region28
      $region27: #{tpu_custom_call.1} parent=5 // pred_region
        %s146 = ssub.s32 %s15, 1
        %s147 = sand.u32 %s28, 1
        %s148 = scalar_lea.sflag [#allocation3], %s147
        %s149 = sand.u32 %s28, 1
        %s150 = smul.addr %s149, 8
        %s151 = scalar_lea.vmem [#allocation2], %s150
        // Predicated region
        $region29: #{tpu_custom_call.1} parent=27 // pred_check
          %p152 = pneg %p41
        $region30: #{tpu_custom_call.1} parent=27 // pred_check_branch
          %154 = sbr.rel (%p152) target = $region32
        $region31: #{tpu_custom_call.1} parent=27 // pred_region
          %156 = dma.done %s148, 128
        $region32: #{tpu_custom_call.1} parent=27 // pred_fallthru
          _
        // Predicated region
        $region33: #{tpu_custom_call.1} parent=27 // pred_check
          %p157 = pneg %p62
        $region34: #{tpu_custom_call.1} parent=27 // pred_check_branch
          %159 = sbr.rel (%p157) target = $region36
        $region35: #{tpu_custom_call.1} parent=27 // pred_region
          %161 = dma.done [#allocation6], 2048
        $region36: #{tpu_custom_call.1} parent=27 // pred_fallthru
          _
        %s162 = sand.u32 %s28, 1
        %s163 = scalar_lea.sflag [#allocation3], %s162
        %s164 = sand.u32 %s28, 1
        %s165 = smul.addr %s164, 8
        %s166 = scalar_lea.vmem [#allocation2], %s165
        %p167 = pneg %p41
        %p168 = pneg %p38
        %p169 = pneg %p62
        %p170 = pneg %p59
        %p171 = pneg %p88
        %p172 = pneg %p85
        %s173 = sand.u32 %s75, 1
        %s174 = scalar_lea.sflag [#allocation4], %s173
        %s175 = sand.u32 %s75, 1
        %s176 = smul.addr %s175, 8
        %s177 = scalar_lea.vmem [#allocation7], %s176
        %v178 = vld [vmem:[%s151] sm:$0xff]
        %v179 = vld [vmem:[#allocation5] sm:$0xff]
        %v180 = vld [vmem:[#allocation5 + $0x8] sm:$0xff]
        %v181 = vld [vmem:[#allocation5 + $0x10] sm:$0xff]
        %v182 = vld [vmem:[#allocation5 + $0x18] sm:$0xff]
        %v183 = vld [vmem:[#allocation5 + $0x20] sm:$0xff]
        %v184 = vld [vmem:[#allocation5 + $0x28] sm:$0xff]
        %v185 = vld [vmem:[#allocation5 + $0x30] sm:$0xff]
        %v186 = vld [vmem:[#allocation5 + $0x38] sm:$0xff]
        %v187 = vld [vmem:[#allocation5 + $0x40] sm:$0xff]
        %v188 = vld [vmem:[#allocation5 + $0x48] sm:$0xff]
        %v189 = vld [vmem:[#allocation5 + $0x50] sm:$0xff]
        %v190 = vld [vmem:[#allocation5 + $0x58] sm:$0xff]
        %v191 = vld [vmem:[#allocation5 + $0x60] sm:$0xff]
        %v192 = vld [vmem:[#allocation5 + $0x68] sm:$0xff]
        %v193 = vld [vmem:[#allocation5 + $0x70] sm:$0xff]
        %v194 = vld [vmem:[#allocation5 + $0x78] sm:$0xff]
        %195 = vmatpush.msra.mxu0 %v194
        %196 = vmatpush.msra.mxu0 %v193
        %197 = vmatpush.msra.mxu0 %v192
        %198 = vmatpush.msra.mxu0 %v191
        %199 = vmatpush.msra.mxu0 %v190
        %200 = vmatpush.msra.mxu0 %v189
        %201 = vmatpush.msra.mxu0 %v188
        %202 = vmatpush.msra.mxu0 %v187
        %203 = vmatpush.msra.mxu0 %v186
        %204 = vmatpush.msra.mxu0 %v185
        %205 = vmatpush.msra.mxu0 %v184
        %206 = vmatpush.msra.mxu0 %v183
        %207 = vmatpush.msra.mxu0 %v182
        %208 = vmatpush.msra.mxu0 %v181
        %209 = vmatpush.msra.mxu0 %v180
        %210 = vmatpush.msra.mxu0 %v179
        %211 = vmatmul.f32.gmra.mxu0 %v178
        %v212 = vpop.f32.mrf.mxu0
        %v213 = vadd.f32 0.0, %v212
        %214 = vdwg.mxu0
        %215 = vst [vmem:[%s177] sm:$0xff] %v213
        %s216 = sand.u32 %s75, 1
        %s217 = scalar_lea.sflag [#allocation4], %s216
        %s218 = sand.u32 %s75, 1
        %s219 = smul.addr %s218, 8
        %s220 = scalar_lea.vmem [#allocation7], %s219
        // Predicated region
        $region37: #{tpu_custom_call.1} parent=27 // pred_check
          %p221 = pneg %p85
        $region38: #{tpu_custom_call.1} parent=27 // pred_check_branch
          %223 = sbr.rel (%p221) target = $region40
        $region39: #{tpu_custom_call.1} parent=27 // pred_region
          %225 = vsyncadd %s217, 0
          %s226 = smul.addr %s20, 8
          %s227 = scalar_lea.hbm %s2, %s226
          %s229 = sshll.u32 %s220, 4
          %s230 = int_to_ptr.vmem [resolvable:$true] %s229
          %s231 = sshll.u32 %s227, 4
          %s232 = int_to_ptr.hbm [resolvable:$true] %s231
          %234 = dma.vmem_to_hbm [thread:$0]  %s230, 128, %s232, %s217
        $region40: #{tpu_custom_call.1} parent=27 // pred_fallthru
          _
      $region28: #{tpu_custom_call.1} parent=5 // pred_fallthru
        _
      %p235 = scmp.le.s32.totalorder 2, %s15
      // Predicated region
      $region41: #{tpu_custom_call.1} parent=5 // pred_check
        %p236 = pneg %p235
      $region42: #{tpu_custom_call.1} parent=5 // pred_check_branch
        %238 = sbr.rel (%p236) target = $region44
      $region43: #{tpu_custom_call.1} parent=5 // pred_region
        %s239 = ssub.s32 %s15, 2
        // Predicated region
        $region45: #{tpu_custom_call.1} parent=43 // pred_check
          %p240 = pneg %p91
        $region46: #{tpu_custom_call.1} parent=43 // pred_check_branch
          %242 = sbr.rel (%p240) target = $region48
        $region47: #{tpu_custom_call.1} parent=43 // pred_region
          %s243 = sand.u32 %s76, 1
          %s244 = scalar_lea.sflag [#allocation4], %s243
          %s245 = sand.u32 %s76, 1
          %s246 = smul.addr %s245, 8
          %s247 = scalar_lea.vmem [#allocation7], %s246
          %249 = dma.done %s244, 128
        $region48: #{tpu_custom_call.1} parent=43 // pred_fallthru
          _
      $region44: #{tpu_custom_call.1} parent=5 // pred_fallthru
        _
    $region6: #{tpu_custom_call.1} parent=1 // loop_footer
      %s19 = sadd.s32 1, %s15
    $region7: #{tpu_custom_call.1} parent=1 // loop_footer_branch
      %14 = sbr.rel target = $region3
    $region8: #{tpu_custom_call.1} parent=1 // loop_exit
      _
    %250 = vsyncpa [#allocation3], 1
    %s251 = scalar_lea.sflag [#allocation3], 1
    %252 = vsyncpa %s251, 1
    %253 = vsyncpa [#allocation6], 1
    %254 = vsyncpa [#allocation4], 1
    %s255 = scalar_lea.sflag [#allocation4], 1
    %256 = vsyncpa %s255, 1

</llo_original>
